<compile_context>
chip_gen: v6e
topology: v6e:2x2x1
jax: 0.10.0
libtpu: 0.0.40
codegen_flags: <defaults>
</compile_context>

<pallas_src>
import numpy as np

import jax
import jax.numpy as jnp
from jax.experimental import pallas as pl
from jax.experimental.pallas import tpu as pltpu

_BN_EPS = 1e-5


# ------------------------------ Pallas kernel ------------------------------ #

def _make_double_conv_kernel(bm, h, w, cin, cout):
    """Build the fused kernel for `bm` images of shape (H, W, Cin) per step."""
    kx = (w + 2) * cin          # padded-row lane width, stage 1
    ky = (w + 2) * cout         # padded-row lane width, stage 2
    nout = w * cout             # lane-dense output columns

    def kernel(x_ref, w1_ref, s1_ref, b1_ref, w2_ref, s2_ref, b2_ref,
               out_ref, xpad_ref, ypad_ref):
        fdt = xpad_ref.dtype    # bf16 MXU inputs

        # Zero only the conv pad cells (top/bottom rows + left/right columns).
        # Interior cells are fully overwritten below.  Re-zeroed every step
        # (cheap: O(W*C + H*C) elems) so the kernel stays correct when the
        # batch grid axis is sharded across v7x's two TensorCores -- a
        # zero-once-at-program_id==0 scheme would leave the second core's
        # scratch uninitialised.
        zxr = jnp.zeros((1, kx), fdt)
        zxc = jnp.zeros((h, cin), fdt)
        zyr = jnp.zeros((1, ky), fdt)
        zyc = jnp.zeros((h, cout), fdt)
        for b in range(bm):
            xpad_ref[b, 0:1, :] = zxr
            xpad_ref[b, h + 1:h + 2, :] = zxr
            xpad_ref[b, 1:h + 1, 0:cin] = zxc
            xpad_ref[b, 1:h + 1, cin + w * cin:kx] = zxc
            ypad_ref[b, 0:1, :] = zyr
            ypad_ref[b, h + 1:h + 2, :] = zyr
            ypad_ref[b, 1:h + 1, 0:cout] = zyc
            ypad_ref[b, 1:h + 1, cout + nout:ky] = zyc

        # ---- stage 1: conv1 (one K-stacked MXU matmul) -> BN1 -> ReLU ----
        for b in range(bm):     # write rows at lane offset Cin (left pad)
            xpad_ref[b, 1:h + 1, cin:cin + w * cin] = x_ref[b]
        # LHS row ho = padded rows ho, ho+1, ho+2 concatenated along lanes.
        # NOTE: if H grows, pad the top with 8 rows instead of 1 so these
        # kh-shifted reads stay sublane-tile aligned.
        lhs1 = jnp.concatenate(
            [jnp.concatenate([xpad_ref[b, kh:kh + h, :] for kh in range(3)],
                             axis=-1) for b in range(bm)], axis=0)
        acc1 = jnp.dot(lhs1, w1_ref[...], preferred_element_type=jnp.float32)
        y1 = jnp.maximum(acc1 * s1_ref[...] + b1_ref[...], 0.0)  # (bm*h, nout)

        # ---- stage 2: conv2 -> BN2 -> ReLU (y1 never leaves VMEM) ----
        y1b = y1.astype(fdt)
        for b in range(bm):
            ypad_ref[b, 1:h + 1, cout:cout + nout] = y1b[b * h:(b + 1) * h, :]
        lhs2 = jnp.concatenate(
            [jnp.concatenate([ypad_ref[b, kh:kh + h, :] for kh in range(3)],
                             axis=-1) for b in range(bm)], axis=0)
        acc2 = jnp.dot(lhs2, w2_ref[...], preferred_element_type=jnp.float32)
        y2 = jnp.maximum(acc2 * s2_ref[...] + b2_ref[...], 0.0)
        for b in range(bm):
            out_ref[b] = y2[b * h:(b + 1) * h, :].astype(out_ref.dtype)

    return kernel


# ----------------------- weight / BN folding (one-time) --------------------- #

def _conv3x3_band_kstacked(w_oihw, width):
    """Fold a (Cout, Cin, 3, 3) conv weight into one K-stacked banded matrix.

    band[kh*(W+2)*Cin + (wo+kw)*Cin + ci, wo*Cout + co] = w[co, ci, kh, kw]
    so conv(x, w)[ho, wo, co] == (LHS @ band)[ho, wo*Cout + co] where
    LHS[ho] = concat_kh xpad_row[ho + kh].  Host-side, run once per params.
    """
    w = np.asarray(jax.device_get(w_oihw), np.float32)     # (Cout, Cin, 3, 3)
    cout, cin = w.shape[0], w.shape[1]
    wp2 = width + 2
    band = np.zeros((3, wp2 * cin, width * cout), np.float32)
    for kh in range(3):
        for kw in range(3):
            wt = w[:, :, kh, kw].T                          # (Cin, Cout)
            for wo in range(width):
                u = wo + kw                                 # padded width coord
                band[kh, u * cin:(u + 1) * cin, wo * cout:(wo + 1) * cout] = wt
    return band.reshape(3 * wp2 * cin, width * cout)


def _fold_bn(gamma, beta, mean, var):
    scale = gamma / jnp.sqrt(var + _BN_EPS)
    shift = beta - mean * scale
    return scale, shift


def fold_double_conv_params(params, width):
    """One-time fold: K-stacked banded conv weights + tiled BN scale/shift."""
    s1, b1 = _fold_bn(params["bn1_gamma"], params["bn1_beta"],
                      params["bn1_mean"], params["bn1_var"])
    s2, b2 = _fold_bn(params["bn2_gamma"], params["bn2_beta"],
                      params["bn2_mean"], params["bn2_var"])
    return {
        "w1_band": jnp.asarray(_conv3x3_band_kstacked(params["w1"], width),
                               jnp.bfloat16),
        "w2_band": jnp.asarray(_conv3x3_band_kstacked(params["w2"], width),
                               jnp.bfloat16),
        "s1": jnp.tile(s1, width)[None, :].astype(jnp.float32),
        "b1": jnp.tile(b1, width)[None, :].astype(jnp.float32),
        "s2": jnp.tile(s2, width)[None, :].astype(jnp.float32),
        "b2": jnp.tile(b2, width)[None, :].astype(jnp.float32),
    }


# --------------------------------- wrapper ---------------------------------- #

def _double_conv_forward(x_nchw, folded, *, bm=1, out_dtype=jnp.float32):
    """Pallas DoubleConv.forward (NCHW in, NCHW out) using pre-folded params."""
    n, cin, h, w = x_nchw.shape
    nout = folded["s2"].shape[1]
    cout = nout // w
    if n % bm != 0:
        raise ValueError(f"bm={bm} must divide batch={n}")
    kx, ky = (w + 2) * cin, (w + 2) * cout

    # NCHW -> (N, H, W*Cin) bf16 row slabs.  No host-side column pad: the
    # kernel writes rows into the padded VMEM scratch at lane offset Cin.
    x_rows = jnp.transpose(x_nchw, (0, 2, 3, 1)).reshape(n, h, w * cin)
    x_rows = x_rows.astype(jnp.bfloat16)

    out = pl.pallas_call(
        _make_double_conv_kernel(bm, h, w, cin, cout),
        out_shape=jax.ShapeDtypeStruct((n, h, nout), out_dtype),
        grid=(n // bm,),
        in_specs=[
            pl.BlockSpec((bm, h, w * cin), lambda i: (i, 0, 0)),   # x rows
            pl.BlockSpec((3 * kx, nout), lambda i: (0, 0)),        # conv1 band
            pl.BlockSpec((1, nout), lambda i: (0, 0)),             # bn1 scale
            pl.BlockSpec((1, nout), lambda i: (0, 0)),             # bn1 shift
            pl.BlockSpec((3 * ky, nout), lambda i: (0, 0)),        # conv2 band
            pl.BlockSpec((1, nout), lambda i: (0, 0)),             # bn2 scale
            pl.BlockSpec((1, nout), lambda i: (0, 0)),             # bn2 shift
        ],
        out_specs=pl.BlockSpec((bm, h, nout), lambda i: (i, 0, 0)),
        scratch_shapes=[
            pltpu.VMEM((bm, h + 2, kx), jnp.bfloat16),   # padded input rows
            pltpu.VMEM((bm, h + 2, ky), jnp.bfloat16),   # padded intermediate
        ],
        compiler_params=pltpu.CompilerParams(
            dimension_semantics=("parallel",),           # batch across TCs
            vmem_limit_bytes=32 * 1024 * 1024),          # <= ~48MB on v7x
    )(x_rows, folded["w1_band"], folded["s1"], folded["b1"],
      folded["w2_band"], folded["s2"], folded["b2"])

    # (N, H, W*Cout) slab -> NCHW
    return jnp.transpose(out.reshape(n, h, w, cout), (0, 3, 1, 2))


double_conv_forward = jax.jit(_double_conv_forward,
                              static_argnames=("bm", "out_dtype"))


# ------------------------ deterministic parameter init ---------------------- #

def init_params(key, cin, cout):
    ks = jax.random.split(key, 10)
    return {
        "w1": jax.random.normal(ks[0], (cout, cin, 3, 3), jnp.float32) * 0.1,
        "w2": jax.random.normal(ks[1], (cout, cout, 3, 3), jnp.float32) * 0.1,
        "bn1_gamma": jax.random.uniform(ks[2], (cout,), jnp.float32, 0.5, 1.5),
        "bn1_beta": jax.random.normal(ks[3], (cout,), jnp.float32) * 0.1,
        "bn1_mean": jax.random.normal(ks[4], (cout,), jnp.float32) * 0.1,
        "bn1_var": jax.random.uniform(ks[5], (cout,), jnp.float32, 0.5, 1.5),
        "bn2_gamma": jax.random.uniform(ks[6], (cout,), jnp.float32, 0.5, 1.5),
        "bn2_beta": jax.random.normal(ks[7], (cout,), jnp.float32) * 0.1,
        "bn2_mean": jax.random.normal(ks[8], (cout,), jnp.float32) * 0.1,
        "bn2_var": jax.random.uniform(ks[9], (cout,), jnp.float32, 0.5, 1.5),
    }


# ------------------------------ pure-JAX reference -------------------------- #

def double_conv_reference(x_nchw, params):
    x = jnp.transpose(x_nchw, (0, 2, 3, 1)).astype(jnp.float32)

    def conv(inp, w_oihw):
        w_hwio = jnp.transpose(w_oihw, (2, 3, 1, 0))
        return jax.lax.conv_general_dilated(
            inp, w_hwio, (1, 1), [(1, 1), (1, 1)],
            dimension_numbers=("NHWC", "HWIO", "NHWC"),
            precision=jax.lax.Precision.HIGHEST)

    def bn(inp, g, b, m, v):
        return (inp - m) / jnp.sqrt(v + _BN_EPS) * g + b

    y = jax.nn.relu(bn(conv(x, params["w1"]), params["bn1_gamma"],
                       params["bn1_beta"], params["bn1_mean"], params["bn1_var"]))
    y = jax.nn.relu(bn(conv(y, params["w2"]), params["bn2_gamma"],
                       params["bn2_beta"], params["bn2_mean"], params["bn2_var"]))
    return jnp.transpose(y, (0, 3, 1, 2))


# ----------------------------------- main ----------------------------------- #

if __name__ == "__main__":
    key = jax.random.PRNGKey(0)
    kdat, kp1, kp2 = jax.random.split(key, 3)

    # config A: 4 -> 8 channels, 16x16 (W*Cout = 128 -> fully lane-dense)
    xA = jax.random.normal(kdat, (2, 4, 16, 16), jnp.float32)   # NCHW
    pA = init_params(kp1, 4, 8)
    fA = fold_double_conv_params(pA, width=16)                  # one-time fold
    outA = jax.block_until_ready(double_conv_forward(xA, fA))
    refA = double_conv_reference(xA, pA)
    assert outA.shape == (2, 8, 16, 16)
    # bf16 MXU inputs -> looser tolerance than a pure-f32 path
    assert jnp.allclose(outA, refA, atol=5e-2, rtol=5e-2)

    # config B: the module's default channel config (1 -> 2)
    xB = jax.random.normal(kdat, (2, 1, 16, 16), jnp.float32)
    pB = init_params(kp2, 1, 2)
    fB = fold_double_conv_params(pB, width=16)
    outB = jax.block_until_ready(double_conv_forward(xB, fB))
    refB = double_conv_reference(xB, pB)
    assert outB.shape == (2, 2, 16, 16)
    assert jnp.allclose(outB, refB, atol=5e-2, rtol=5e-2)

    # config C: 2 images per grid step (M = 32 per MXU matmul), batch 4
    xC = jax.random.normal(kdat, (4, 4, 16, 16), jnp.float32)
    outC = jax.block_until_ready(double_conv_forward(xC, fA, bm=2))
    refC = double_conv_reference(xC, pA)
    assert outC.shape == (4, 8, 16, 16)
    assert jnp.allclose(outC, refC, atol=5e-2, rtol=5e-2)

    print("KERNEL_OK")
</pallas_src>

<mosaic_0001>
module attributes {stable_mosaic.version = 11 : i64} {
  func.func @kernel(%arg0: i32, %arg1: memref<1x16x64xbf16, #tpu.memory_space<vmem>>, %arg2: memref<216x128xbf16, #tpu.memory_space<vmem>>, %arg3: memref<1x128xf32, #tpu.memory_space<vmem>>, %arg4: memref<1x128xf32, #tpu.memory_space<vmem>>, %arg5: memref<432x128xbf16, #tpu.memory_space<vmem>>, %arg6: memref<1x128xf32, #tpu.memory_space<vmem>>, %arg7: memref<1x128xf32, #tpu.memory_space<vmem>>, %arg8: memref<1x16x128xf32, #tpu.memory_space<vmem>>, %arg9: memref<1x18x72xbf16, #tpu.memory_space<vmem>>, %arg10: memref<1x18x144xbf16, #tpu.memory_space<vmem>>) attributes {dimension_semantics = [#tpu.dimension_semantics<parallel>], iteration_bounds = array<i64: 2>, scalar_prefetch = 0 : i64, scratch_operands = 2 : i64, tpu.core_type = #tpu.core_type<tc>, window_params = [{transform_indices = @transform_0, window_bounds = array<i64: 1, 16, 64>}, {pipeline_mode = #tpu.pipeline_mode<synchronous>, transform_indices = @transform_1, window_bounds = array<i64: 216, 128>}, {pipeline_mode = #tpu.pipeline_mode<synchronous>, transform_indices = @transform_2, window_bounds = array<i64: 1, 128>}, {pipeline_mode = #tpu.pipeline_mode<synchronous>, transform_indices = @transform_3, window_bounds = array<i64: 1, 128>}, {pipeline_mode = #tpu.pipeline_mode<synchronous>, transform_indices = @transform_4, window_bounds = array<i64: 432, 128>}, {pipeline_mode = #tpu.pipeline_mode<synchronous>, transform_indices = @transform_5, window_bounds = array<i64: 1, 128>}, {pipeline_mode = #tpu.pipeline_mode<synchronous>, transform_indices = @transform_6, window_bounds = array<i64: 1, 128>}, {transform_indices = @transform_7, window_bounds = array<i64: 1, 16, 128>}]} {
    %cst = arith.constant 0.000000e+00 : bf16
    %0 = vector.broadcast %cst : bf16 to vector<1x72xbf16>
    %cst_0 = arith.constant 0.000000e+00 : bf16
    %1 = vector.broadcast %cst_0 : bf16 to vector<16x4xbf16>
    %cst_1 = arith.constant 0.000000e+00 : bf16
    %2 = vector.broadcast %cst_1 : bf16 to vector<1x144xbf16>
    %cst_2 = arith.constant 0.000000e+00 : bf16
    %3 = vector.broadcast %cst_2 : bf16 to vector<16x8xbf16>
    %c0 = arith.constant 0 : index
    %c0_3 = arith.constant 0 : index
    %c0_4 = arith.constant 0 : index
    %4 = vector.load %arg9[%c0, %c0_3, %c0_4] : memref<1x18x72xbf16, #tpu.memory_space<vmem>>, vector<1x1x72xbf16>
    %5 = vector.shape_cast %4 : vector<1x1x72xbf16> to vector<1x72xbf16>
    %6 = vector.shape_cast %0 : vector<1x72xbf16> to vector<1x1x72xbf16>
    tpu.vector_store %arg9[%c0, %c0_3, %c0_4], %6 {strides = array<i32>} : memref<1x18x72xbf16, #tpu.memory_space<vmem>>, vector<1x1x72xbf16>,
    %c0_5 = arith.constant 0 : index
    %c17 = arith.constant 17 : index
    %c0_6 = arith.constant 0 : index
    %7 = vector.load %arg9[%c0_5, %c17, %c0_6] : memref<1x18x72xbf16, #tpu.memory_space<vmem>>, vector<1x1x72xbf16>
    %8 = vector.shape_cast %7 : vector<1x1x72xbf16> to vector<1x72xbf16>
    %9 = vector.shape_cast %0 : vector<1x72xbf16> to vector<1x1x72xbf16>
    tpu.vector_store %arg9[%c0_5, %c17, %c0_6], %9 {strides = array<i32>} : memref<1x18x72xbf16, #tpu.memory_space<vmem>>, vector<1x1x72xbf16>,
    %c0_7 = arith.constant 0 : index
    %c1 = arith.constant 1 : index
    %c0_8 = arith.constant 0 : index
    %10 = vector.load %arg9[%c0_7, %c1, %c0_8] : memref<1x18x72xbf16, #tpu.memory_space<vmem>>, vector<1x16x4xbf16>
    %11 = vector.shape_cast %10 : vector<1x16x4xbf16> to vector<16x4xbf16>
    %12 = vector.shape_cast %1 : vector<16x4xbf16> to vector<1x16x4xbf16>
    tpu.vector_store %arg9[%c0_7, %c1, %c0_8], %12 {strides = array<i32>} : memref<1x18x72xbf16, #tpu.memory_space<vmem>>, vector<1x16x4xbf16>,
    %c0_9 = arith.constant 0 : index
    %c1_10 = arith.constant 1 : index
    %c68 = arith.constant 68 : index
    %13 = vector.load %arg9[%c0_9, %c1_10, %c68] : memref<1x18x72xbf16, #tpu.memory_space<vmem>>, vector<1x16x4xbf16>
    %14 = vector.shape_cast %13 : vector<1x16x4xbf16> to vector<16x4xbf16>
    %15 = vector.shape_cast %1 : vector<16x4xbf16> to vector<1x16x4xbf16>
    tpu.vector_store %arg9[%c0_9, %c1_10, %c68], %15 {strides = array<i32>} : memref<1x18x72xbf16, #tpu.memory_space<vmem>>, vector<1x16x4xbf16>,
    %c0_11 = arith.constant 0 : index
    %c0_12 = arith.constant 0 : index
    %c0_13 = arith.constant 0 : index
    %16 = vector.load %arg10[%c0_11, %c0_12, %c0_13] : memref<1x18x144xbf16, #tpu.memory_space<vmem>>, vector<1x1x144xbf16>
    %17 = vector.shape_cast %16 : vector<1x1x144xbf16> to vector<1x144xbf16>
    %18 = vector.shape_cast %2 : vector<1x144xbf16> to vector<1x1x144xbf16>
    tpu.vector_store %arg10[%c0_11, %c0_12, %c0_13], %18 {strides = array<i32>} : memref<1x18x144xbf16, #tpu.memory_space<vmem>>, vector<1x1x144xbf16>,
    %c0_14 = arith.constant 0 : index
    %c17_15 = arith.constant 17 : index
    %c0_16 = arith.constant 0 : index
    %19 = vector.load %arg10[%c0_14, %c17_15, %c0_16] : memref<1x18x144xbf16, #tpu.memory_space<vmem>>, vector<1x1x144xbf16>
    %20 = vector.shape_cast %19 : vector<1x1x144xbf16> to vector<1x144xbf16>
    %21 = vector.shape_cast %2 : vector<1x144xbf16> to vector<1x1x144xbf16>
    tpu.vector_store %arg10[%c0_14, %c17_15, %c0_16], %21 {strides = array<i32>} : memref<1x18x144xbf16, #tpu.memory_space<vmem>>, vector<1x1x144xbf16>,
    %c0_17 = arith.constant 0 : index
    %c1_18 = arith.constant 1 : index
    %c0_19 = arith.constant 0 : index
    %22 = vector.load %arg10[%c0_17, %c1_18, %c0_19] : memref<1x18x144xbf16, #tpu.memory_space<vmem>>, vector<1x16x8xbf16>
    %23 = vector.shape_cast %22 : vector<1x16x8xbf16> to vector<16x8xbf16>
    %24 = vector.shape_cast %3 : vector<16x8xbf16> to vector<1x16x8xbf16>
    tpu.vector_store %arg10[%c0_17, %c1_18, %c0_19], %24 {strides = array<i32>} : memref<1x18x144xbf16, #tpu.memory_space<vmem>>, vector<1x16x8xbf16>,
    %c0_20 = arith.constant 0 : index
    %c1_21 = arith.constant 1 : index
    %c136 = arith.constant 136 : index
    %25 = vector.load %arg10[%c0_20, %c1_21, %c136] : memref<1x18x144xbf16, #tpu.memory_space<vmem>>, vector<1x16x8xbf16>
    %26 = vector.shape_cast %25 : vector<1x16x8xbf16> to vector<16x8xbf16>
    %27 = vector.shape_cast %3 : vector<16x8xbf16> to vector<1x16x8xbf16>
    tpu.vector_store %arg10[%c0_20, %c1_21, %c136], %27 {strides = array<i32>} : memref<1x18x144xbf16, #tpu.memory_space<vmem>>, vector<1x16x8xbf16>,
    %c0_22 = arith.constant 0 : index
    %c0_23 = arith.constant 0 : index
    %c0_24 = arith.constant 0 : index
    %28 = vector.load %arg1[%c0_22, %c0_23, %c0_24] : memref<1x16x64xbf16, #tpu.memory_space<vmem>>, vector<1x16x64xbf16>
    %29 = vector.shape_cast %28 : vector<1x16x64xbf16> to vector<16x64xbf16>
    %c0_25 = arith.constant 0 : index
    %c1_26 = arith.constant 1 : index
    %c4 = arith.constant 4 : index
    %30 = vector.load %arg9[%c0_25, %c1_26, %c4] : memref<1x18x72xbf16, #tpu.memory_space<vmem>>, vector<1x16x64xbf16>
    %31 = vector.shape_cast %30 : vector<1x16x64xbf16> to vector<16x64xbf16>
    %32 = vector.shape_cast %29 : vector<16x64xbf16> to vector<1x16x64xbf16>
    tpu.vector_store %arg9[%c0_25, %c1_26, %c4], %32 {strides = array<i32>} : memref<1x18x72xbf16, #tpu.memory_space<vmem>>, vector<1x16x64xbf16>,
    %c0_27 = arith.constant 0 : index
    %c0_28 = arith.constant 0 : index
    %c0_29 = arith.constant 0 : index
    %33 = vector.load %arg9[%c0_27, %c0_28, %c0_29] : memref<1x18x72xbf16, #tpu.memory_space<vmem>>, vector<1x16x72xbf16>
    %34 = vector.shape_cast %33 : vector<1x16x72xbf16> to vector<16x72xbf16>
    %c0_30 = arith.constant 0 : index
    %c1_31 = arith.constant 1 : index
    %c0_32 = arith.constant 0 : index
    %35 = vector.load %arg9[%c0_30, %c1_31, %c0_32] : memref<1x18x72xbf16, #tpu.memory_space<vmem>>, vector<1x16x72xbf16>
    %36 = vector.shape_cast %35 : vector<1x16x72xbf16> to vector<16x72xbf16>
    %c0_33 = arith.constant 0 : index
    %c2 = arith.constant 2 : index
    %c0_34 = arith.constant 0 : index
    %37 = vector.load %arg9[%c0_33, %c2, %c0_34] : memref<1x18x72xbf16, #tpu.memory_space<vmem>>, vector<1x16x72xbf16>
    %38 = vector.shape_cast %37 : vector<1x16x72xbf16> to vector<16x72xbf16>
    %39 = tpu.concatenate %34, %36, %38 in 1 : vector<16x72xbf16>, vector<16x72xbf16>, vector<16x72xbf16> -> vector<16x216xbf16>
    %c0_35 = arith.constant 0 : index
    %c0_36 = arith.constant 0 : index
    %40 = vector.load %arg2[%c0_35, %c0_36] : memref<216x128xbf16, #tpu.memory_space<vmem>>, vector<216x128xbf16>
    %cst_37 = arith.constant dense<0.000000e+00> : vector<16x128xf32>
    %41 = tpu.matmul %39, %40, %cst_37 {dimension_numbers = #tpu.dot_dimension_numbers<[1], [0], [0], [1], [0, 0, 1, 1], [], []>} : vector<16x216xbf16>, vector<216x128xbf16>, vector<16x128xf32> -> vector<16x128xf32>
    %c0_38 = arith.constant 0 : index
    %c0_39 = arith.constant 0 : index
    %42 = vector.load %arg3[%c0_38, %c0_39] : memref<1x128xf32, #tpu.memory_space<vmem>>, vector<1x128xf32>
    %43 = vector.broadcast %42 : vector<1x128xf32> to vector<16x128xf32>
    %44 = arith.mulf %41, %43 : vector<16x128xf32>
    %c0_40 = arith.constant 0 : index
    %c0_41 = arith.constant 0 : index
    %45 = vector.load %arg4[%c0_40, %c0_41] : memref<1x128xf32, #tpu.memory_space<vmem>>, vector<1x128xf32>
    %46 = vector.broadcast %45 : vector<1x128xf32> to vector<16x128xf32>
    %47 = arith.addf %44, %46 : vector<16x128xf32>
    %cst_42 = arith.constant 0.000000e+00 : f32
    %48 = vector.broadcast %cst_42 : f32 to vector<16x128xf32>
    %49 = arith.maximumf %47, %48 : vector<16x128xf32>
    %50 = arith.truncf %49 : vector<16x128xf32> to vector<16x128xbf16>
    %c0_43 = arith.constant 0 : index
    %c1_44 = arith.constant 1 : index
    %c8 = arith.constant 8 : index
    %51 = vector.load %arg10[%c0_43, %c1_44, %c8] : memref<1x18x144xbf16, #tpu.memory_space<vmem>>, vector<1x16x128xbf16>
    %52 = vector.shape_cast %51 : vector<1x16x128xbf16> to vector<16x128xbf16>
    %53 = vector.shape_cast %50 : vector<16x128xbf16> to vector<1x16x128xbf16>
    tpu.vector_store %arg10[%c0_43, %c1_44, %c8], %53 {strides = array<i32>} : memref<1x18x144xbf16, #tpu.memory_space<vmem>>, vector<1x16x128xbf16>,
    %c0_45 = arith.constant 0 : index
    %c0_46 = arith.constant 0 : index
    %c0_47 = arith.constant 0 : index
    %54 = vector.load %arg10[%c0_45, %c0_46, %c0_47] : memref<1x18x144xbf16, #tpu.memory_space<vmem>>, vector<1x16x144xbf16>
    %55 = vector.shape_cast %54 : vector<1x16x144xbf16> to vector<16x144xbf16>
    %c0_48 = arith.constant 0 : index
    %c1_49 = arith.constant 1 : index
    %c0_50 = arith.constant 0 : index
    %56 = vector.load %arg10[%c0_48, %c1_49, %c0_50] : memref<1x18x144xbf16, #tpu.memory_space<vmem>>, vector<1x16x144xbf16>
    %57 = vector.shape_cast %56 : vector<1x16x144xbf16> to vector<16x144xbf16>
    %c0_51 = arith.constant 0 : index
    %c2_52 = arith.constant 2 : index
    %c0_53 = arith.constant 0 : index
    %58 = vector.load %arg10[%c0_51, %c2_52, %c0_53] : memref<1x18x144xbf16, #tpu.memory_space<vmem>>, vector<1x16x144xbf16>
    %59 = vector.shape_cast %58 : vector<1x16x144xbf16> to vector<16x144xbf16>
    %60 = tpu.concatenate %55, %57, %59 in 1 : vector<16x144xbf16>, vector<16x144xbf16>, vector<16x144xbf16> -> vector<16x432xbf16>
    %c0_54 = arith.constant 0 : index
    %c0_55 = arith.constant 0 : index
    %61 = vector.load %arg5[%c0_54, %c0_55] : memref<432x128xbf16, #tpu.memory_space<vmem>>, vector<432x128xbf16>
    %cst_56 = arith.constant dense<0.000000e+00> : vector<16x128xf32>
    %62 = tpu.matmul %60, %61, %cst_56 {dimension_numbers = #tpu.dot_dimension_numbers<[1], [0], [0], [1], [0, 0, 1, 1], [], []>} : vector<16x432xbf16>, vector<432x128xbf16>, vector<16x128xf32> -> vector<16x128xf32>
    %c0_57 = arith.constant 0 : index
    %c0_58 = arith.constant 0 : index
    %63 = vector.load %arg6[%c0_57, %c0_58] : memref<1x128xf32, #tpu.memory_space<vmem>>, vector<1x128xf32>
    %64 = vector.broadcast %63 : vector<1x128xf32> to vector<16x128xf32>
    %65 = arith.mulf %62, %64 : vector<16x128xf32>
    %c0_59 = arith.constant 0 : index
    %c0_60 = arith.constant 0 : index
    %66 = vector.load %arg7[%c0_59, %c0_60] : memref<1x128xf32, #tpu.memory_space<vmem>>, vector<1x128xf32>
    %67 = vector.broadcast %66 : vector<1x128xf32> to vector<16x128xf32>
    %68 = arith.addf %65, %67 : vector<16x128xf32>
    %cst_61 = arith.constant 0.000000e+00 : f32
    %69 = vector.broadcast %cst_61 : f32 to vector<16x128xf32>
    %70 = arith.maximumf %68, %69 : vector<16x128xf32>
    %c0_62 = arith.constant 0 : index
    %c0_63 = arith.constant 0 : index
    %c0_64 = arith.constant 0 : index
    %71 = vector.load %arg8[%c0_62, %c0_63, %c0_64] : memref<1x16x128xf32, #tpu.memory_space<vmem>>, vector<1x16x128xf32>
    %72 = vector.shape_cast %71 : vector<1x16x128xf32> to vector<16x128xf32>
    %73 = vector.shape_cast %70 : vector<16x128xf32> to vector<1x16x128xf32>
    tpu.vector_store %arg8[%c0_62, %c0_63, %c0_64], %73 {strides = array<i32>} : memref<1x16x128xf32, #tpu.memory_space<vmem>>, vector<1x16x128xf32>,
    return
  }
  func.func @transform_0(%arg0: i32) -> (i32, i32, i32) {
    %c0_i32 = arith.constant 0 : i32
    %c0_i32_0 = arith.constant 0 : i32
    %c0_i32_1 = arith.constant 0 : i32
    return %arg0, %c0_i32, %c0_i32_0 : i32, i32, i32
  }
  func.func @transform_1(%arg0: i32) -> (i32, i32) {
    %c0_i32 = arith.constant 0 : i32
    %c0_i32_0 = arith.constant 0 : i32
    %c0_i32_1 = arith.constant 0 : i32
    return %c0_i32, %c0_i32_0 : i32, i32
  }
  func.func @transform_2(%arg0: i32) -> (i32, i32) {
    %c0_i32 = arith.constant 0 : i32
    %c0_i32_0 = arith.constant 0 : i32
    %c0_i32_1 = arith.constant 0 : i32
    return %c0_i32, %c0_i32_0 : i32, i32
  }
  func.func @transform_3(%arg0: i32) -> (i32, i32) {
    %c0_i32 = arith.constant 0 : i32
    %c0_i32_0 = arith.constant 0 : i32
    %c0_i32_1 = arith.constant 0 : i32
    return %c0_i32, %c0_i32_0 : i32, i32
  }
  func.func @transform_4(%arg0: i32) -> (i32, i32) {
    %c0_i32 = arith.constant 0 : i32
    %c0_i32_0 = arith.constant 0 : i32
    %c0_i32_1 = arith.constant 0 : i32
    return %c0_i32, %c0_i32_0 : i32, i32
  }
  func.func @transform_5(%arg0: i32) -> (i32, i32) {
    %c0_i32 = arith.constant 0 : i32
    %c0_i32_0 = arith.constant 0 : i32
    %c0_i32_1 = arith.constant 0 : i32
    return %c0_i32, %c0_i32_0 : i32, i32
  }
  func.func @transform_6(%arg0: i32) -> (i32, i32) {
    %c0_i32 = arith.constant 0 : i32
    %c0_i32_0 = arith.constant 0 : i32
    %c0_i32_1 = arith.constant 0 : i32
    return %c0_i32, %c0_i32_0 : i32, i32
  }
  func.func @transform_7(%arg0: i32) -> (i32, i32, i32) {
    %c0_i32 = arith.constant 0 : i32
    %c0_i32_0 = arith.constant 0 : i32
    %c0_i32_1 = arith.constant 0 : i32
    return %arg0, %c0_i32, %c0_i32_0 : i32, i32, i32
  }
}

</mosaic_0001>

<llo_original>
// kernel: _double_conv_forward.1
$region0: #{_double_conv_forward.1}
  #allocation0 [shape = 'u32[]', space=smem, size = 0x4, offset = 0x4, fixed_abs, tag = 'smem constant byte address 0x4 - core index']
  #allocation1 [shape = 'u32[144,128]{1,0:T(1,128)}', space=vmem, size = 0x12000, scoped, tag = 'internal scratch']
  #allocation2 [shape = 'bf16[1,18,72]{2,1,0:T(8,128)(2,1)}', space=vmem, size = 0x1800, scoped, tag = 'scratch operand']
  #allocation3 [shape = 'bf16[1,18,144]{2,1,0:T(8,128)(2,1)}', space=vmem, size = 0x3000, scoped, tag = 'scratch operand']
  %s0 = inlined_call_operand.vmem [shape: bf16[2,16,64], index: 0, kind: input, shape index: {}]
  %s1 = inlined_call_operand.vmem [shape: bf16[216,128], index: 1, kind: input, shape index: {}]
  %s2 = inlined_call_operand.vmem [shape: f32[1,128], index: 2, kind: input, shape index: {}]
  %s3 = inlined_call_operand.vmem [shape: f32[1,128], index: 3, kind: input, shape index: {}]
  %s4 = inlined_call_operand.vmem [shape: bf16[432,128], index: 4, kind: input, shape index: {}]
  %s5 = inlined_call_operand.vmem [shape: f32[1,128], index: 5, kind: input, shape index: {}]
  %s6 = inlined_call_operand.vmem [shape: f32[1,128], index: 6, kind: input, shape index: {}]
  %s7 = inlined_call_operand.vmem [shape: f32[2,16,128], index: 7, kind: output, shape index: {}]
  %s8 = sld [smem:[#allocation0]]
  $region61: #{_double_conv_forward.1} parent=0
    _
  %s10 = ssub.s32 1, %s8
  %s11 = scalar_select 0, %s10, %s8
  loop: start=0, step=1, limit=4
  $region2: #{_double_conv_forward.1} parent=0 // loop_pre_header
    _
  $region3: #{_double_conv_forward.1} parent=0 // loop_header
    %s13 = sphi 0, %s17
    %p14 = scmp.ge.s32.totalorder %s13, 4
    %s23 = sphi 0, %s25
    %s26 = sphi 0, %s23
    %s27 = sphi 0, %s26
    %s43 = sphi 0, %s27
    %s47 = sphi 0, %s47
    %s49 = sphi 0, %s47
    %s50 = sphi 0, %s49
    %s64 = sphi 0, %s50
    %s68 = sphi 0, %s68
    %s70 = sphi 0, %s68
    %s71 = sphi 0, %s70
    %s85 = sphi 0, %s71
    %s89 = sphi 0, %s89
    %s91 = sphi 0, %s89
    %s92 = sphi 0, %s91
    %s106 = sphi 0, %s92
    %s110 = sphi 0, %s110
    %s112 = sphi 0, %s110
    %s113 = sphi 0, %s112
    %s127 = sphi 0, %s113
    %s131 = sphi 0, %s131
    %s133 = sphi 0, %s131
    %s134 = sphi 0, %s133
    %s148 = sphi 0, %s134
    %s152 = sphi 0, %s152
    %s154 = sphi 0, %s152
    %s155 = sphi 0, %s154
    %s169 = sphi 0, %s155
    %s175 = sphi 0, %s177
    %s178 = sphi 0, %s175
    %s179 = sphi 0, %s178
    %s195 = sphi 0, %s179
  $region4: #{_double_conv_forward.1} parent=0 // loop_header_branch
    %16 = sbr.rel (%p14) target = $region8
  $region5: #{_double_conv_forward.1} parent=0 // loop_body
    %s18 = ssub.s32 %s13, 1
    %s19 = ssub.s32 %s13, 2
    %s20 = sadd.s32 %s13, 1
    %s21 = ssub.s32 %s13, %s20
    %p22 = scmp.eq.s32.totalorder %s21, 0
    %s24 = sadd.s32 %s23, 1
    %s25 = scalar_select %p22, %s23, %s24
    %p28 = pneg %p22
    %p29 = scmp.eq.s32.totalorder %s13, 1
    %p30 = por %p28, %p29
    %p31 = scmp.ne.s32.totalorder %s23, %s26
    %p32 = scmp.eq.s32.totalorder %s13, 0
    %p33 = por %p31, %p32
    %p34 = scmp.ne.s32.totalorder %s23, %s26
    %p35 = scmp.eq.s32.totalorder %s18, 1
    %p36 = por %p34, %p35
    %p37 = scmp.ne.s32.totalorder %s26, %s27
    %p38 = scmp.eq.s32.totalorder %s18, 0
    %p39 = por %p37, %p38
    %p40 = scmp.ne.s32.totalorder %s26, %s27
    %p41 = scmp.eq.s32.totalorder %s19, 1
    %p42 = por %p40, %p41
    %p44 = scmp.ne.s32.totalorder %s27, %s43
    %p45 = scmp.eq.s32.totalorder %s19, 0
    %p46 = por %p44, %p45
    %s48 = sadd.s32 %s47, 1
    %p51 = scmp.eq.s32.totalorder %s13, 1
    %p52 = scmp.ne.s32.totalorder %s47, %s49
    %p53 = scmp.eq.s32.totalorder %s13, 0
    %p54 = por %p52, %p53
    %p55 = scmp.ne.s32.totalorder %s47, %s49
    %p56 = scmp.eq.s32.totalorder %s18, 1
    %p57 = por %p55, %p56
    %p58 = scmp.ne.s32.totalorder %s49, %s50
    %p59 = scmp.eq.s32.totalorder %s18, 0
    %p60 = por %p58, %p59
    %p61 = scmp.ne.s32.totalorder %s49, %s50
    %p62 = scmp.eq.s32.totalorder %s19, 1
    %p63 = por %p61, %p62
    %p65 = scmp.ne.s32.totalorder %s50, %s64
    %p66 = scmp.eq.s32.totalorder %s19, 0
    %p67 = por %p65, %p66
    %s69 = sadd.s32 %s68, 1
    %p72 = scmp.eq.s32.totalorder %s13, 1
    %p73 = scmp.ne.s32.totalorder %s68, %s70
    %p74 = scmp.eq.s32.totalorder %s13, 0
    %p75 = por %p73, %p74
    %p76 = scmp.ne.s32.totalorder %s68, %s70
    %p77 = scmp.eq.s32.totalorder %s18, 1
    %p78 = por %p76, %p77
    %p79 = scmp.ne.s32.totalorder %s70, %s71
    %p80 = scmp.eq.s32.totalorder %s18, 0
    %p81 = por %p79, %p80
    %p82 = scmp.ne.s32.totalorder %s70, %s71
    %p83 = scmp.eq.s32.totalorder %s19, 1
    %p84 = por %p82, %p83
    %p86 = scmp.ne.s32.totalorder %s71, %s85
    %p87 = scmp.eq.s32.totalorder %s19, 0
    %p88 = por %p86, %p87
    %s90 = sadd.s32 %s89, 1
    %p93 = scmp.eq.s32.totalorder %s13, 1
    %p94 = scmp.ne.s32.totalorder %s89, %s91
    %p95 = scmp.eq.s32.totalorder %s13, 0
    %p96 = por %p94, %p95
    %p97 = scmp.ne.s32.totalorder %s89, %s91
    %p98 = scmp.eq.s32.totalorder %s18, 1
    %p99 = por %p97, %p98
    %p100 = scmp.ne.s32.totalorder %s91, %s92
    %p101 = scmp.eq.s32.totalorder %s18, 0
    %p102 = por %p100, %p101
    %p103 = scmp.ne.s32.totalorder %s91, %s92
    %p104 = scmp.eq.s32.totalorder %s19, 1
    %p105 = por %p103, %p104
    %p107 = scmp.ne.s32.totalorder %s92, %s106
    %p108 = scmp.eq.s32.totalorder %s19, 0
    %p109 = por %p107, %p108
    %s111 = sadd.s32 %s110, 1
    %p114 = scmp.eq.s32.totalorder %s13, 1
    %p115 = scmp.ne.s32.totalorder %s110, %s112
    %p116 = scmp.eq.s32.totalorder %s13, 0
    %p117 = por %p115, %p116
    %p118 = scmp.ne.s32.totalorder %s110, %s112
    %p119 = scmp.eq.s32.totalorder %s18, 1
    %p120 = por %p118, %p119
    %p121 = scmp.ne.s32.totalorder %s112, %s113
    %p122 = scmp.eq.s32.totalorder %s18, 0
    %p123 = por %p121, %p122
    %p124 = scmp.ne.s32.totalorder %s112, %s113
    %p125 = scmp.eq.s32.totalorder %s19, 1
    %p126 = por %p124, %p125
    %p128 = scmp.ne.s32.totalorder %s113, %s127
    %p129 = scmp.eq.s32.totalorder %s19, 0
    %p130 = por %p128, %p129
    %s132 = sadd.s32 %s131, 1
    %p135 = scmp.eq.s32.totalorder %s13, 1
    %p136 = scmp.ne.s32.totalorder %s131, %s133
    %p137 = scmp.eq.s32.totalorder %s13, 0
    %p138 = por %p136, %p137
    %p139 = scmp.ne.s32.totalorder %s131, %s133
    %p140 = scmp.eq.s32.totalorder %s18, 1
    %p141 = por %p139, %p140
    %p142 = scmp.ne.s32.totalorder %s133, %s134
    %p143 = scmp.eq.s32.totalorder %s18, 0
    %p144 = por %p142, %p143
    %p145 = scmp.ne.s32.totalorder %s133, %s134
    %p146 = scmp.eq.s32.totalorder %s19, 1
    %p147 = por %p145, %p146
    %p149 = scmp.ne.s32.totalorder %s134, %s148
    %p150 = scmp.eq.s32.totalorder %s19, 0
    %p151 = por %p149, %p150
    %s153 = sadd.s32 %s152, 1
    %p156 = scmp.eq.s32.totalorder %s13, 1
    %p157 = scmp.ne.s32.totalorder %s152, %s154
    %p158 = scmp.eq.s32.totalorder %s13, 0
    %p159 = por %p157, %p158
    %p160 = scmp.ne.s32.totalorder %s152, %s154
    %p161 = scmp.eq.s32.totalorder %s18, 1
    %p162 = por %p160, %p161
    %p163 = scmp.ne.s32.totalorder %s154, %s155
    %p164 = scmp.eq.s32.totalorder %s18, 0
    %p165 = por %p163, %p164
    %p166 = scmp.ne.s32.totalorder %s154, %s155
    %p167 = scmp.eq.s32.totalorder %s19, 1
    %p168 = por %p166, %p167
    %p170 = scmp.ne.s32.totalorder %s155, %s169
    %p171 = scmp.eq.s32.totalorder %s19, 0
    %p172 = por %p170, %p171
    %s173 = ssub.s32 %s13, %s20
    %p174 = scmp.eq.s32.totalorder %s173, 0
    %s176 = sadd.s32 %s175, 1
    %s177 = scalar_select %p174, %s175, %s176
    %p180 = pneg %p174
    %p181 = scmp.eq.s32.totalorder %s13, 1
    %p182 = por %p180, %p181
    %p183 = scmp.ne.s32.totalorder %s175, %s178
    %p184 = scmp.eq.s32.totalorder %s13, 0
    %p185 = por %p183, %p184
    %p186 = scmp.ne.s32.totalorder %s175, %s178
    %p187 = scmp.eq.s32.totalorder %s18, 1
    %p188 = por %p186, %p187
    %p189 = scmp.ne.s32.totalorder %s178, %s179
    %p190 = scmp.eq.s32.totalorder %s18, 0
    %p191 = por %p189, %p190
    %p192 = scmp.ne.s32.totalorder %s178, %s179
    %p193 = scmp.eq.s32.totalorder %s19, 1
    %p194 = por %p192, %p193
    %p196 = scmp.ne.s32.totalorder %s179, %s195
    %p197 = scmp.eq.s32.totalorder %s19, 0
    %p198 = por %p196, %p197
    %p199 = scmp.le.s32.totalorder 1, %s13
    %p200 = scmp.lt.s32.totalorder %s13, 3
    %p201 = pnand %p199, %p200
    %p202 = pneg %p201
    // Predicated region
    $region9: #{_double_conv_forward.1} parent=5 // pred_check
      _
    $region10: #{_double_conv_forward.1} parent=5 // pred_check_branch
      %204 = sbr.rel (%p201) target = $region12
    $region11: #{_double_conv_forward.1} parent=5 // pred_region
      %s205 = ssub.s32 %s13, 1
      // Predicated region
      $region13: #{_double_conv_forward.1} parent=11 // pred_check
        %p206 = pneg %p60
      $region14: #{_double_conv_forward.1} parent=11 // pred_check_branch
        %208 = sbr.rel (%p206) target = $region16
      $region15: #{_double_conv_forward.1} parent=11 // pred_region
        _
      $region16: #{_double_conv_forward.1} parent=11 // pred_fallthru
        _
      // Predicated region
      $region17: #{_double_conv_forward.1} parent=11 // pred_check
        %p209 = pneg %p81
      $region18: #{_double_conv_forward.1} parent=11 // pred_check_branch
        %211 = sbr.rel (%p209) target = $region20
      $region19: #{_double_conv_forward.1} parent=11 // pred_region
        _
      $region20: #{_double_conv_forward.1} parent=11 // pred_fallthru
        _
      // Predicated region
      $region21: #{_double_conv_forward.1} parent=11 // pred_check
        %p212 = pneg %p102
      $region22: #{_double_conv_forward.1} parent=11 // pred_check_branch
        %214 = sbr.rel (%p212) target = $region24
      $region23: #{_double_conv_forward.1} parent=11 // pred_region
        _
      $region24: #{_double_conv_forward.1} parent=11 // pred_fallthru
        _
      // Predicated region
      $region25: #{_double_conv_forward.1} parent=11 // pred_check
        %p215 = pneg %p123
      $region26: #{_double_conv_forward.1} parent=11 // pred_check_branch
        %217 = sbr.rel (%p215) target = $region28
      $region27: #{_double_conv_forward.1} parent=11 // pred_region
        _
      $region28: #{_double_conv_forward.1} parent=11 // pred_fallthru
        _
      // Predicated region
      $region29: #{_double_conv_forward.1} parent=11 // pred_check
        %p218 = pneg %p144
      $region30: #{_double_conv_forward.1} parent=11 // pred_check_branch
        %220 = sbr.rel (%p218) target = $region32
      $region31: #{_double_conv_forward.1} parent=11 // pred_region
        _
      $region32: #{_double_conv_forward.1} parent=11 // pred_fallthru
        _
      // Predicated region
      $region33: #{_double_conv_forward.1} parent=11 // pred_check
        %p221 = pneg %p165
      $region34: #{_double_conv_forward.1} parent=11 // pred_check_branch
        %223 = sbr.rel (%p221) target = $region36
      $region35: #{_double_conv_forward.1} parent=11 // pred_region
        _
      $region36: #{_double_conv_forward.1} parent=11 // pred_fallthru
        _
    $region12: #{_double_conv_forward.1} parent=5 // pred_fallthru
      _
    %p224 = scmp.lt.s32.totalorder %s13, 2
    // Predicated region
    $region37: #{_double_conv_forward.1} parent=5 // pred_check
      %p225 = pneg %p224
    $region38: #{_double_conv_forward.1} parent=5 // pred_check_branch
      %227 = sbr.rel (%p225) target = $region40
    $region39: #{_double_conv_forward.1} parent=5 // pred_region
      // Predicated region
      $region41: #{_double_conv_forward.1} parent=39 // pred_check
        %p228 = pneg %p33
      $region42: #{_double_conv_forward.1} parent=39 // pred_check_branch
        %230 = sbr.rel (%p228) target = $region44
      $region43: #{_double_conv_forward.1} parent=39 // pred_region
        %p231 = scmp.lt.s32.totalorder %s13, 1
        %s232 = scalar_select %p231, %s13, 1
        %s233 = smul.addr %s232, 2
        %s234 = smul.addr %s233, 4
        %s235 = scalar_lea.vmem %s0, %s234
      $region44: #{_double_conv_forward.1} parent=39 // pred_fallthru
        _
    $region40: #{_double_conv_forward.1} parent=5 // pred_fallthru
      _
    %p236 = scmp.le.s32.totalorder 1, %s13
    %p237 = scmp.lt.s32.totalorder %s13, 3
    %p238 = pnand %p236, %p237
    %p239 = pneg %p238
    // Predicated region
    $region45: #{_double_conv_forward.1} parent=5 // pred_check
      _
    $region46: #{_double_conv_forward.1} parent=5 // pred_check_branch
      %241 = sbr.rel (%p238) target = $region48
    $region47: #{_double_conv_forward.1} parent=5 // pred_region
      %s242 = ssub.s32 %s13, 1
      %p243 = scmp.lt.s32.totalorder %s18, 1
      %s244 = scalar_select %p243, %s18, 1
      %s245 = smul.addr %s244, 2
      %s246 = smul.addr %s245, 4
      %s247 = scalar_lea.vmem %s0, %s246
      %p248 = pneg %p39
      %p249 = pneg %p36
      %p250 = pneg %p60
      %p251 = pneg %p57
      %p252 = pneg %p81
      %p253 = pneg %p78
      %p254 = pneg %p102
      %p255 = pneg %p99
      %p256 = pneg %p123
      %p257 = pneg %p120
      %p258 = pneg %p144
      %p259 = pneg %p141
      %p260 = pneg %p165
      %p261 = pneg %p162
      %p262 = pneg %p191
      %p263 = pneg %p188
      %p264 = scmp.lt.s32.totalorder %s18, 1
      %s265 = scalar_select %p264, %s18, 1
      %s266 = smul.addr %s265, 2
      %s267 = smul.addr %s266, 8
      %s268 = scalar_lea.vmem %s7, %s267
      %p269 = scmp.lt.s32.totalorder %s18, 1
      %s270 = scalar_select %p269, %s18, 1
      %s271 = smul.addr %s270, 2
      %s272 = smul.addr %s271, 4
      %s273 = scalar_lea.vmem %s0, %s272
      %p274 = scmp.lt.s32.totalorder %s18, 1
      %s275 = scalar_select %p274, %s18, 1
      %s276 = smul.addr %s275, 2
      %s277 = smul.addr %s276, 8
      %s278 = scalar_lea.vmem %s7, %s277
      %vm280 = vcmask 581632
      %vm281 = vsmask.f32 256
      %vm282 = vmand %vm280, %vm281
      %v283 = vld [vmem:[#allocation2] sm:$0x1]
      %v284 = vsel %vm282, 0, %v283
      %285 = vst [vmem:[#allocation2] sm:$0x1] %v284
      %vm286 = vsmask.f32 7938
      %vm287 = vmand %vm280, %vm286
      %v288 = vld [vmem:[#allocation2 + $0x8] sm:$0x1]
      %v289 = vsel %vm287, 0, %v288
      %290 = vst [vmem:[#allocation2 + $0x8] sm:$0x1] %v289
      %vm291 = vcmask 27648
      %vm292 = vmand %vm291, %vm286
      %v293 = vld [vmem:[#allocation2] sm:$0xf]
      %v294 = vsel %vm292, 0, %v293
      %295 = vst [vmem:[#allocation2] sm:$0xf] %v294
      %vm296 = vcmask 27648
      %297 = vst.msk [vmem:[#allocation2 + $0x4] sm:$0xf] %vm296, 0
      %vm298 = vcmask 24576
      %vm299 = vmand %vm298, %vm281
      %v300 = vld [vmem:[#allocation2 + $0x8] sm:$0x1]
      %v301 = vsel %vm299, 0, %v300
      %302 = vst [vmem:[#allocation2 + $0x8] sm:$0x1] %v301
      %vm303 = vcmask 585248
      %vm304 = vmand %vm303, %vm286
      %v305 = vld [vmem:[#allocation2] sm:$0xf]
      %v306 = vsel %vm304, 0, %v305
      %307 = vst [vmem:[#allocation2] sm:$0xf] %v306
      %vm308 = vcmask 585248
      %309 = vst.msk [vmem:[#allocation2 + $0x4] sm:$0xf] %vm308, 0
      %vm310 = vcmask 582176
      %vm311 = vmand %vm310, %vm281
      %v312 = vld [vmem:[#allocation2 + $0x8] sm:$0x1]
      %v313 = vsel %vm311, 0, %v312
      %314 = vst [vmem:[#allocation2 + $0x8] sm:$0x1] %v313
      %vm315 = vcmask 1040384
      %vm316 = vmand %vm315, %vm281
      %vm317 = vcmask 126980
      %vm318 = vsmask.f32 4352
      %vm319 = vmand %vm317, %vm318
      %vm320 = vmor %vm319, %vm316
      %v321 = vld [vmem:[#allocation3] sm:$0x11]
      %v322 = vsel %vm320, 0, %v321
      %323 = vst [vmem:[#allocation3] sm:$0x11] %v322
      %vm324 = vmand %vm315, %vm286
      %vm325 = vsmask.f32 7954
      %vm326 = vmand %vm317, %vm325
      %vm327 = vmor %vm326, %vm324
      %v328 = vld [vmem:[#allocation3 + $0x10] sm:$0x11]
      %v329 = vsel %vm327, 0, %v328
      %330 = vst [vmem:[#allocation3 + $0x10] sm:$0x11] %v329
      %vm331 = vcmask 60416
      %vm332 = vmand %vm331, %vm286
      %v333 = vld [vmem:[#allocation3] sm:$0xf]
      %v334 = vsel %vm332, 0, %v333
      %335 = vst [vmem:[#allocation3] sm:$0xf] %v334
      %vm336 = vcmask 60416
      %337 = vst.msk [vmem:[#allocation3 + $0x8] sm:$0xf] %vm336, 0
      %vm338 = vcmask 57344
      %vm339 = vmand %vm338, %vm281
      %v340 = vld [vmem:[#allocation3 + $0x10] sm:$0x1]
      %v341 = vsel %vm339, 0, %v340
      %342 = vst [vmem:[#allocation3 + $0x10] sm:$0x1] %v341
      %vm343 = vcmask 126016
      %vm344 = vmand %vm343, %vm286
      %v345 = vld [vmem:[#allocation3 + $0x4] sm:$0xf]
      %v346 = vsel %vm344, 0, %v345
      %347 = vst [vmem:[#allocation3 + $0x4] sm:$0xf] %v346
      %vm348 = vcmask 126016
      %349 = vst.msk [vmem:[#allocation3 + $0xc] sm:$0xf] %vm348, 0
      %vm350 = vcmask 122944
      %vm351 = vmand %vm350, %vm281
      %v352 = vld [vmem:[#allocation3 + $0x14] sm:$0x1]
      %v353 = vsel %vm351, 0, %v352
      %354 = vst [vmem:[#allocation3 + $0x14] sm:$0x1] %v353
      %v355 = vld [vmem:[%s273] sm:$0xf]
      %v356 = vld [vmem:[%s273 + $0x4] sm:$0xf]
      %vm357 = vsmask.f32 4368
      %vm358 = vmor %vm281, %vm357
      %v360 = vshrl.u32 %v355, 16
      %v362 = vrot.slane %v360, 7
      %v363 = vshll.u32 %v355, 16
      %v365 = vor.u32 %v362, %v363
      %v366 = vrot.slane %v362, 4
      %v368 = vshrl.u32 %v356, 16
      %v370 = vrot.slane %v368, 7
      %v371 = vshll.u32 %v356, 16
      %v373 = vor.u32 %v370, %v371
      %v374 = vsel %vm358, %v366, %v373
      %v375 = vrot.slane %v370, 4
      %376 = vrot.lane.b32.xlu0 %v365, 4
      %v377 = vpop.permute.xlu0 %376
      %378 = vrot.lane.b32.xlu0 %v374, 4
      %v379 = vpop.permute.xlu0 %378
      %380 = vrot.lane.b32.xlu0 %v375, 4
      %v381 = vpop.permute.xlu0 %380
      %vm385 = vcmask 551968
      %vm386 = vmand %vm385, %vm286
      %v387 = vld [vmem:[#allocation2] sm:$0xf]
      %v388 = vsel %vm386, %v377, %v387
      %389 = vst [vmem:[#allocation2] sm:$0xf] %v388
      %vm390 = vcmask 551968
      %391 = vst.msk [vmem:[#allocation2 + $0x4] sm:$0xf] %vm390, %v379
      %vm392 = vcmask 548896
      %vm393 = vmand %vm392, %vm281
      %v394 = vld [vmem:[#allocation2 + $0x8] sm:$0x1]
      %v395 = vsel %vm393, %v381, %v394
      %396 = vst [vmem:[#allocation2 + $0x8] sm:$0x1] %v395
      %v397 = vld [vmem:[#allocation2] sm:$0xf]
      %v398 = vld [vmem:[#allocation2 + $0x4] sm:$0xf]
      %v399 = vld [vmem:[#allocation2 + $0x8] sm:$0x1]
      %v400 = vld [vmem:[#allocation2] sm:$0xe]
      %v403 = vunpack.c.l.b16 %v397
      %v404 = vunpack.c.l.b16 %v398
      %v405 = vpack.c.b16 %v404, %v403
      %v407 = vunpack.c.l.b16 %v399
      %v408 = vpack.c.b16 %v407, %v407
      %vm409 = vsmask.f32 7424
      %v411 = vshrl.u32 %v405, 16
      %v413 = vshll.u32 %v405, 16
      %v415 = vrot.slane %v413, 1
      %v416 = vor.u32 %v411, %v415
      %v418 = vshll.u32 %v408, 16
      %v420 = vrot.slane %v418, 1
      %v421 = vsel %vm409, %v416, %v420
      %422 = vrot.lane.b32.xlu0 %v421, 72
      %v423 = vpop.permute.xlu0 %422
      %v425 = vunpack.c.l.b16 %v400
      %v426 = vpack.c.b16 %v404, %v425
      %vm427 = vcmask 1046528
      %v428 = vrot.slane %v426, 1
      %v429 = vrot.slane %v408, 1
      %v430 = vsel %vm427, %v428, %v429
      %431 = vrot.lane.b32.xlu0 %v430, 16
      %v432 = vpop.permute.xlu0 %431
      %vm433 = vcmask 588800
      %v435 = vsel %vm433, %v405, %v423
      %vm437 = vcmask 130048
      %v439 = vsel %vm437, %v423, %v432
      %v440 = vld [vmem:[%s1] sm:$0xf]
      %v441 = vld [vmem:[%s1 + $0x4] sm:$0xf]
      %v442 = vld [vmem:[%s1 + $0x8] sm:$0xf]
      %v443 = vld [vmem:[%s1 + $0xc] sm:$0xf]
      %v444 = vld [vmem:[%s1 + $0x10] sm:$0xf]
      %v445 = vld [vmem:[%s1 + $0x14] sm:$0xf]
      %v446 = vld [vmem:[%s1 + $0x18] sm:$0xf]
      %v447 = vld [vmem:[%s1 + $0x1c] sm:$0xf]
      %v448 = vld [vmem:[%s1 + $0x20] sm:$0xf]
      %v449 = vld [vmem:[%s1 + $0x24] sm:$0xf]
      %v450 = vld [vmem:[%s1 + $0x28] sm:$0xf]
      %v451 = vld [vmem:[%s1 + $0x2c] sm:$0xf]
      %v452 = vld [vmem:[%s1 + $0x30] sm:$0xf]
      %v453 = vld [vmem:[%s1 + $0x34] sm:$0xf]
      %v454 = vld [vmem:[%s1 + $0x38] sm:$0xf]
      %v455 = vld [vmem:[%s1 + $0x3c] sm:$0xf]
      %v456 = vld [vmem:[%s1 + $0x40] sm:$0xf]
      %v457 = vld [vmem:[%s1 + $0x44] sm:$0xf]
      %v458 = vld [vmem:[%s1 + $0x48] sm:$0xf]
      %v459 = vld [vmem:[%s1 + $0x4c] sm:$0xf]
      %v460 = vld [vmem:[%s1 + $0x50] sm:$0xf]
      %v461 = vld [vmem:[%s1 + $0x54] sm:$0xf]
      %v462 = vld [vmem:[%s1 + $0x58] sm:$0xf]
      %v463 = vld [vmem:[%s1 + $0x5c] sm:$0xf]
      %v464 = vld [vmem:[%s1 + $0x60] sm:$0xf]
      %v465 = vld [vmem:[%s1 + $0x64] sm:$0xf]
      %v466 = vld [vmem:[%s1 + $0x68] sm:$0xf]
      %v494 = vunpack.c.l.b16 %v440
      %v495 = vunpack.c.l.b16 %v441
      %v496 = vunpack.c.l.b16 %v442
      %v497 = vunpack.c.l.b16 %v443
      %v498 = vunpack.c.l.b16 %v444
      %v499 = vunpack.c.l.b16 %v445
      %v500 = vunpack.c.l.b16 %v446
      %v501 = vunpack.c.l.b16 %v447
      %v502 = vunpack.c.l.b16 %v448
      %v503 = vunpack.c.l.b16 %v449
      %v504 = vunpack.c.l.b16 %v450
      %v505 = vunpack.c.l.b16 %v451
      %v506 = vunpack.c.l.b16 %v452
      %v507 = vunpack.c.l.b16 %v453
      %v508 = vunpack.c.l.b16 %v454
      %v509 = vunpack.c.l.b16 %v455
      %v510 = vunpack.c.l.b16 %v456
      %v511 = vunpack.c.l.b16 %v457
      %v512 = vunpack.c.l.b16 %v458
      %v513 = vunpack.c.l.b16 %v459
      %v514 = vunpack.c.l.b16 %v460
      %v515 = vunpack.c.l.b16 %v461
      %v516 = vunpack.c.l.b16 %v462
      %v517 = vunpack.c.l.b16 %v463
      %v518 = vunpack.c.l.b16 %v464
      %v519 = vunpack.c.l.b16 %v465
      %v520 = vunpack.c.l.b16 %v466
      %v521 = vpack.c.b16 %v495, %v494
      %v522 = vpack.c.b16 %v497, %v496
      %v523 = vpack.c.b16 %v499, %v498
      %v524 = vpack.c.b16 %v501, %v500
      %v525 = vpack.c.b16 %v503, %v502
      %v526 = vpack.c.b16 %v505, %v504
      %v527 = vpack.c.b16 %v507, %v506
      %v528 = vpack.c.b16 %v509, %v508
      %v529 = vpack.c.b16 %v511, %v510
      %v530 = vpack.c.b16 %v513, %v512
      %v531 = vpack.c.b16 %v515, %v514
      %v532 = vpack.c.b16 %v517, %v516
      %v533 = vpack.c.b16 %v519, %v518
      %v534 = vpack.c.b16 %v520, %v520
      %vm548 = vcmask 719872
      %v549 = vsel %vm548, %v439, 0
      %vm551 = vcmask 1043456
      %v553 = vsel %vm551, %v534, 0
      %555 = vmatprep.subr.bf16.mxu0 0
      %556 = vmatpush1.bf16.msra.mxu0 %v528
      %557 = vmatprep.subr.bf16.mxu0 0
      %558 = vmatpush1.bf16.msra.mxu0 %v527
      %559 = vmatprep.subr.bf16.mxu0 0
      %560 = vmatpush1.bf16.msra.mxu0 %v526
      %561 = vmatprep.subr.bf16.mxu0 0
      %562 = vmatpush1.bf16.msra.mxu0 %v525
      %563 = vmatprep.subr.bf16.mxu0 0
      %564 = vmatpush1.bf16.msra.mxu0 %v524
      %565 = vmatprep.subr.bf16.mxu0 0
      %566 = vmatpush1.bf16.msra.mxu0 %v523
      %567 = vmatprep.subr.bf16.mxu0 0
      %568 = vmatpush1.bf16.msra.mxu0 %v522
      %569 = vmatprep.subr.bf16.mxu0 0
      %570 = vmatpush1.bf16.msra.mxu0 %v521
      %571 = vmatprep.subr.bf16.mxu0 0
      %572 = vmatpush2.bf16.msra.mxu0 0
      %573 = vmatprep.subr.bf16.mxu0 0
      %574 = vmatpush2.bf16.msra.mxu0 0
      %575 = vmatprep.subr.bf16.mxu0 0
      %576 = vmatpush2.bf16.msra.mxu0 %v553
      %577 = vmatprep.subr.bf16.mxu0 0
      %578 = vmatpush2.bf16.msra.mxu0 %v533
      %579 = vmatprep.subr.bf16.mxu0 0
      %580 = vmatpush2.bf16.msra.mxu0 %v532
      %581 = vmatprep.subr.bf16.mxu0 0
      %582 = vmatpush2.bf16.msra.mxu0 %v531
      %583 = vmatprep.subr.bf16.mxu0 0
      %584 = vmatpush2.bf16.msra.mxu0 %v530
      %585 = vmatprep.subr.bf16.mxu0 0
      %586 = vmatpush2.bf16.msra.mxu0 %v529
      %587 = vmatprep.mubr.bf16.mxu0 %v549
      %588 = vmatmul.mubr.bf16.gmra.mxu0 %v435
      %v589 = vpop.f32.mrf.mxu0
      %v590 = vadd.f32 0.0, %v589
      %v591 = vpop.f32.mrf.mxu0
      %v592 = vpop.f32.mrf.mxu0
      %v593 = vadd.f32 0.0, %v592
      %v594 = vpop.f32.mrf.mxu0
      %595 = vdwg.mxu0
      %v596 = vld [vmem:[%s2] sm:$0x1]
      %v598 = vlaneseq
      %v599 = vshrl.u32 %v598, 7
      %v600 = vsub.s32 0, %v599
      %v601 = vrot.slane %v596, %v600
      %v603 = vmul.f32 %v590, %v601
      %v604 = vmul.f32 %v593, %v601
      %v605 = vld [vmem:[%s3] sm:$0x1]
      %v607 = vlaneseq
      %v608 = vshrl.u32 %v607, 7
      %v609 = vsub.s32 0, %v608
      %v610 = vrot.slane %v605, %v609
      %v612 = vadd.f32 %v603, %v610
      %v613 = vadd.f32 %v604, %v610
      %v614 = vmax.f32 %v612, 0.0
      %v615 = vmax.f32 %v613, 0.0
      %v616 = vpack.c.bf16 %v615, %v614
      %v618 = vunpack.c.l.b16 %v616
      %v619 = vunpack.c.h.b16 %v616
      %v620 = vpack.c.b16 %v618, %v618
      %v621 = vpack.c.b16 %v619, %v619
      %v623 = vshrl.u32 %v620, 16
      %v625 = vrot.slane %v623, 7
      %v626 = vshll.u32 %v620, 16
      %v628 = vor.u32 %v625, %v626
      %v629 = vrot.slane %v625, 4
      %v631 = vshrl.u32 %v621, 16
      %v633 = vrot.slane %v631, 7
      %v634 = vshll.u32 %v621, 16
      %v636 = vor.u32 %v633, %v634
      %v637 = vsel %vm358, %v629, %v636
      %v638 = vrot.slane %v633, 4
      %639 = vrot.lane.b32.xlu0 %v628, 8
      %v640 = vpop.permute.xlu0 %639
      %641 = vrot.lane.b32.xlu0 %v637, 8
      %v642 = vpop.permute.xlu0 %641
      %643 = vrot.lane.b32.xlu0 %v638, 8
      %v644 = vpop.permute.xlu0 %643
      %v645 = vrot.slane %v640, 4
      %v646 = vrot.slane %v642, 4
      %v647 = vrot.slane %v644, 4
      %vm648 = vcmask 64512
      %v649 = vsel %vm648, %v645, %v640
      %v650 = vsel %vm648, %v646, %v642
      %v651 = vsel %vm648, %v647, %v644
      %vm655 = vcmask 1043520
      %vm656 = vmand %vm655, %vm286
      %vm657 = vcmask 64516
      %vm658 = vmand %vm657, %vm325
      %vm659 = vmor %vm658, %vm656
      %v660 = vld [vmem:[#allocation3] sm:$0xff]
      %v661 = vsel %vm659, %v649, %v660
      %662 = vst [vmem:[#allocation3] sm:$0xff] %v661
      %vm663 = vcmask 1043520
      %vm664 = vcmask 64516
      %vm665 = vmor %vm664, %vm663
      %666 = vst.msk [vmem:[#allocation3 + $0x8] sm:$0xff] %vm665, %v650
      %vm667 = vcmask 1040448
      %vm668 = vmand %vm667, %vm281
      %vm669 = vcmask 61444
      %vm670 = vmand %vm669, %vm318
      %vm671 = vmor %vm670, %vm668
      %v672 = vld [vmem:[#allocation3 + $0x10] sm:$0x11]
      %v673 = vsel %vm671, %v651, %v672
      %674 = vst [vmem:[#allocation3 + $0x10] sm:$0x11] %v673
      %v675 = vld [vmem:[#allocation3] sm:$0xff]
      %v676 = vld [vmem:[#allocation3 + $0x8] sm:$0xff]
      %v677 = vld [vmem:[#allocation3 + $0x10] sm:$0x11]
      %v678 = vld [vmem:[#allocation3] sm:$0xee]
      %v681 = vunpack.c.l.b16 %v675
      %v682 = vunpack.c.h.b16 %v675
      %v683 = vunpack.c.l.b16 %v676
      %v684 = vunpack.c.h.b16 %v676
      %v685 = vpack.c.b16 %v683, %v681
      %v686 = vpack.c.b16 %v684, %v682
      %v689 = vunpack.c.l.b16 %v677
      %v690 = vunpack.c.h.b16 %v677
      %v691 = vpack.c.b16 %v689, %v689
      %v692 = vpack.c.b16 %v690, %v690
      %v694 = vshrl.u32 %v685, 16
      %v696 = vshll.u32 %v685, 16
      %v698 = vrot.slane %v696, 1
      %v699 = vor.u32 %v694, %v698
      %v701 = vshll.u32 %v691, 16
      %v703 = vrot.slane %v701, 1
      %v704 = vsel %vm409, %v699, %v703
      %v706 = vshrl.u32 %v686, 16
      %v708 = vshll.u32 %v686, 16
      %v710 = vrot.slane %v708, 1
      %v711 = vor.u32 %v706, %v710
      %v713 = vshll.u32 %v692, 16
      %v715 = vrot.slane %v713, 1
      %v716 = vsel %vm409, %v711, %v715
      %717 = vrot.lane.b32.xlu0 %v704, 16
      %v718 = vpop.permute.xlu0 %717
      %719 = vrot.lane.b32.xlu0 %v716, 16
      %v720 = vpop.permute.xlu0 %719
      %vm721 = vcmask 130048
      %v722 = vsel %vm721, %v718, %v720
      %v724 = vunpack.c.l.b16 %v678
      %v725 = vunpack.c.h.b16 %v678
      %v726 = vpack.c.b16 %v683, %v724
      %v727 = vpack.c.b16 %v684, %v725
      %v728 = vrot.slane %v726, 1
      %v729 = vrot.slane %v691, 1
      %v730 = vsel %vm427, %v728, %v729
      %v731 = vrot.slane %v727, 1
      %v732 = vrot.slane %v692, 1
      %v733 = vsel %vm427, %v731, %v732
      %734 = vrot.lane.b32.xlu0 %v730, 32
      %v735 = vpop.permute.xlu0 %734
      %736 = vrot.lane.b32.xlu0 %v733, 32
      %v737 = vpop.permute.xlu0 %736
      %vm738 = vcmask 261120
      %v739 = vsel %vm738, %v735, %v737
      %v741 = vsel %vm437, %v686, %v718
      %vm743 = vcmask 261120
      %v746 = vsel %vm743, %v722, %v735
      %v748 = vld [vmem:[%s4] sm:$0xf]
      %v749 = vld [vmem:[%s4 + $0x4] sm:$0xf]
      %v750 = vld [vmem:[%s4 + $0x8] sm:$0xf]
      %v751 = vld [vmem:[%s4 + $0xc] sm:$0xf]
      %v752 = vld [vmem:[%s4 + $0x10] sm:$0xf]
      %v753 = vld [vmem:[%s4 + $0x14] sm:$0xf]
      %v754 = vld [vmem:[%s4 + $0x18] sm:$0xf]
      %v755 = vld [vmem:[%s4 + $0x1c] sm:$0xf]
      %v756 = vld [vmem:[%s4 + $0x20] sm:$0xf]
      %v757 = vld [vmem:[%s4 + $0x24] sm:$0xf]
      %v758 = vld [vmem:[%s4 + $0x28] sm:$0xf]
      %v759 = vld [vmem:[%s4 + $0x2c] sm:$0xf]
      %v760 = vld [vmem:[%s4 + $0x30] sm:$0xf]
      %v761 = vld [vmem:[%s4 + $0x34] sm:$0xf]
      %v762 = vld [vmem:[%s4 + $0x38] sm:$0xf]
      %v763 = vld [vmem:[%s4 + $0x3c] sm:$0xf]
      %v764 = vld [vmem:[%s4 + $0x40] sm:$0xf]
      %v765 = vld [vmem:[%s4 + $0x44] sm:$0xf]
      %v766 = vld [vmem:[%s4 + $0x48] sm:$0xf]
      %v767 = vld [vmem:[%s4 + $0x4c] sm:$0xf]
      %v768 = vld [vmem:[%s4 + $0x50] sm:$0xf]
      %v769 = vld [vmem:[%s4 + $0x54] sm:$0xf]
      %v770 = vld [vmem:[%s4 + $0x58] sm:$0xf]
      %v771 = vld [vmem:[%s4 + $0x5c] sm:$0xf]
      %v772 = vld [vmem:[%s4 + $0x60] sm:$0xf]
      %v773 = vld [vmem:[%s4 + $0x64] sm:$0xf]
      %v774 = vld [vmem:[%s4 + $0x68] sm:$0xf]
      %v775 = vld [vmem:[%s4 + $0x6c] sm:$0xf]
      %v776 = vld [vmem:[%s4 + $0x70] sm:$0xf]
      %v777 = vld [vmem:[%s4 + $0x74] sm:$0xf]
      %v778 = vld [vmem:[%s4 + $0x78] sm:$0xf]
      %v779 = vld [vmem:[%s4 + $0x7c] sm:$0xf]
      %v780 = vld [vmem:[%s4 + $0x80] sm:$0xf]
      %v781 = vld [vmem:[%s4 + $0x84] sm:$0xf]
      %v782 = vld [vmem:[%s4 + $0x88] sm:$0xf]
      %v783 = vld [vmem:[%s4 + $0x8c] sm:$0xf]
      %v784 = vld [vmem:[%s4 + $0x90] sm:$0xf]
      %v785 = vld [vmem:[%s4 + $0x94] sm:$0xf]
      %v786 = vld [vmem:[%s4 + $0x98] sm:$0xf]
      %v787 = vld [vmem:[%s4 + $0x9c] sm:$0xf]
      %v788 = vld [vmem:[%s4 + $0xa0] sm:$0xf]
      %v789 = vld [vmem:[%s4 + $0xa4] sm:$0xf]
      %v790 = vld [vmem:[%s4 + $0xa8] sm:$0xf]
      %v791 = vld [vmem:[%s4 + $0xac] sm:$0xf]
      %v792 = vld [vmem:[%s4 + $0xb0] sm:$0xf]
      %v793 = vld [vmem:[%s4 + $0xb4] sm:$0xf]
      %v794 = vld [vmem:[%s4 + $0xb8] sm:$0xf]
      %v795 = vld [vmem:[%s4 + $0xbc] sm:$0xf]
      %v796 = vld [vmem:[%s4 + $0xc0] sm:$0xf]
      %v797 = vld [vmem:[%s4 + $0xc4] sm:$0xf]
      %v798 = vld [vmem:[%s4 + $0xc8] sm:$0xf]
      %v799 = vld [vmem:[%s4 + $0xcc] sm:$0xf]
      %v800 = vld [vmem:[%s4 + $0xd0] sm:$0xf]
      %v801 = vld [vmem:[%s4 + $0xd4] sm:$0xf]
      %v856 = vunpack.c.l.b16 %v748
      %v857 = vunpack.c.l.b16 %v749
      %v858 = vunpack.c.l.b16 %v750
      %v859 = vunpack.c.l.b16 %v751
      %v860 = vunpack.c.l.b16 %v752
      %v861 = vunpack.c.l.b16 %v753
      %v862 = vunpack.c.l.b16 %v754
      %v863 = vunpack.c.l.b16 %v755
      %v864 = vunpack.c.l.b16 %v756
      %v865 = vunpack.c.l.b16 %v757
      %v866 = vunpack.c.l.b16 %v758
      %v867 = vunpack.c.l.b16 %v759
      %v868 = vunpack.c.l.b16 %v760
      %v869 = vunpack.c.l.b16 %v761
      %v870 = vunpack.c.l.b16 %v762
      %v871 = vunpack.c.l.b16 %v763
      %v872 = vunpack.c.l.b16 %v764
      %v873 = vunpack.c.l.b16 %v765
      %v874 = vunpack.c.l.b16 %v766
      %v875 = vunpack.c.l.b16 %v767
      %v876 = vunpack.c.l.b16 %v768
      %v877 = vunpack.c.l.b16 %v769
      %v878 = vunpack.c.l.b16 %v770
      %v879 = vunpack.c.l.b16 %v771
      %v880 = vunpack.c.l.b16 %v772
      %v881 = vunpack.c.l.b16 %v773
      %v882 = vunpack.c.l.b16 %v774
      %v883 = vunpack.c.l.b16 %v775
      %v884 = vunpack.c.l.b16 %v776
      %v885 = vunpack.c.l.b16 %v777
      %v886 = vunpack.c.l.b16 %v778
      %v887 = vunpack.c.l.b16 %v779
      %v888 = vunpack.c.l.b16 %v780
      %v889 = vunpack.c.l.b16 %v781
      %v890 = vunpack.c.l.b16 %v782
      %v891 = vunpack.c.l.b16 %v783
      %v892 = vunpack.c.l.b16 %v784
      %v893 = vunpack.c.l.b16 %v785
      %v894 = vunpack.c.l.b16 %v786
      %v895 = vunpack.c.l.b16 %v787
      %v896 = vunpack.c.l.b16 %v788
      %v897 = vunpack.c.l.b16 %v789
      %v898 = vunpack.c.l.b16 %v790
      %v899 = vunpack.c.l.b16 %v791
      %v900 = vunpack.c.l.b16 %v792
      %v901 = vunpack.c.l.b16 %v793
      %v902 = vunpack.c.l.b16 %v794
      %v903 = vunpack.c.l.b16 %v795
      %v904 = vunpack.c.l.b16 %v796
      %v905 = vunpack.c.l.b16 %v797
      %v906 = vunpack.c.l.b16 %v798
      %v907 = vunpack.c.l.b16 %v799
      %v908 = vunpack.c.l.b16 %v800
      %v909 = vunpack.c.l.b16 %v801
      %v910 = vpack.c.b16 %v857, %v856
      %v911 = vpack.c.b16 %v859, %v858
      %v912 = vpack.c.b16 %v861, %v860
      %v913 = vpack.c.b16 %v863, %v862
      %v914 = vpack.c.b16 %v865, %v864
      %v915 = vpack.c.b16 %v867, %v866
      %v916 = vpack.c.b16 %v869, %v868
      %v917 = vpack.c.b16 %v871, %v870
      %v918 = vpack.c.b16 %v873, %v872
      %v919 = vpack.c.b16 %v875, %v874
      %v920 = vpack.c.b16 %v877, %v876
      %v921 = vpack.c.b16 %v879, %v878
      %v922 = vpack.c.b16 %v881, %v880
      %v923 = vpack.c.b16 %v883, %v882
      %v924 = vpack.c.b16 %v885, %v884
      %v925 = vpack.c.b16 %v887, %v886
      %v926 = vpack.c.b16 %v889, %v888
      %v927 = vpack.c.b16 %v891, %v890
      %v928 = vpack.c.b16 %v893, %v892
      %v929 = vpack.c.b16 %v895, %v894
      %v930 = vpack.c.b16 %v897, %v896
      %v931 = vpack.c.b16 %v899, %v898
      %v932 = vpack.c.b16 %v901, %v900
      %v933 = vpack.c.b16 %v903, %v902
      %v934 = vpack.c.b16 %v905, %v904
      %v935 = vpack.c.b16 %v907, %v906
      %v936 = vpack.c.b16 %v909, %v908
      %vm964 = vcmask 392192
      %v966 = vsel %vm964, %v739, 0
      %968 = vmatprep.subr.bf16.mxu0 0
      %969 = vmatpush1.bf16.msra.mxu0 %v917
      %970 = vmatprep.subr.bf16.mxu0 0
      %971 = vmatpush1.bf16.msra.mxu0 %v916
      %972 = vmatprep.subr.bf16.mxu0 0
      %973 = vmatpush1.bf16.msra.mxu0 %v915
      %974 = vmatprep.subr.bf16.mxu0 0
      %975 = vmatpush1.bf16.msra.mxu0 %v914
      %976 = vmatprep.subr.bf16.mxu0 0
      %977 = vmatpush1.bf16.msra.mxu0 %v913
      %978 = vmatprep.subr.bf16.mxu0 0
      %979 = vmatpush1.bf16.msra.mxu0 %v912
      %980 = vmatprep.subr.bf16.mxu0 0
      %981 = vmatpush1.bf16.msra.mxu0 %v911
      %982 = vmatprep.subr.bf16.mxu0 0
      %983 = vmatpush1.bf16.msra.mxu0 %v910
      %984 = vmatprep.subr.bf16.mxu0 0
      %985 = vmatpush2.bf16.msra.mxu0 %v925
      %986 = vmatprep.subr.bf16.mxu0 0
      %987 = vmatpush2.bf16.msra.mxu0 %v924
      %988 = vmatprep.subr.bf16.mxu0 0
      %989 = vmatpush2.bf16.msra.mxu0 %v923
      %990 = vmatprep.subr.bf16.mxu0 0
      %991 = vmatpush2.bf16.msra.mxu0 %v922
      %992 = vmatprep.subr.bf16.mxu0 0
      %993 = vmatpush2.bf16.msra.mxu0 %v921
      %994 = vmatprep.subr.bf16.mxu0 0
      %995 = vmatpush2.bf16.msra.mxu0 %v920
      %996 = vmatprep.subr.bf16.mxu0 0
      %997 = vmatpush2.bf16.msra.mxu0 %v919
      %998 = vmatprep.subr.bf16.mxu0 0
      %999 = vmatpush2.bf16.msra.mxu0 %v918
      %1000 = vmatprep.mubr.bf16.mxu0 %v741
      %1001 = vmatmul.mubr.bf16.gmra.mxu0 %v685
      %v1002 = vpop.f32.mrf.mxu0
      %v1003 = vadd.f32 0.0, %v1002
      %v1004 = vpop.f32.mrf.mxu0
      %v1005 = vpop.f32.mrf.mxu0
      %v1006 = vadd.f32 0.0, %v1005
      %v1007 = vpop.f32.mrf.mxu0
      %1008 = vdwg.mxu0
      %1009 = vmatprep.subr.bf16.mxu0 0
      %1010 = vmatpush1.bf16.msra.mxu0 %v933
      %1011 = vmatprep.subr.bf16.mxu0 0
      %1012 = vmatpush1.bf16.msra.mxu0 %v932
      %1013 = vmatprep.subr.bf16.mxu0 0
      %1014 = vmatpush1.bf16.msra.mxu0 %v931
      %1015 = vmatprep.subr.bf16.mxu0 0
      %1016 = vmatpush1.bf16.msra.mxu0 %v930
      %1017 = vmatprep.subr.bf16.mxu0 0
      %1018 = vmatpush1.bf16.msra.mxu0 %v929
      %1019 = vmatprep.subr.bf16.mxu0 0
      %1020 = vmatpush1.bf16.msra.mxu0 %v928
      %1021 = vmatprep.subr.bf16.mxu0 0
      %1022 = vmatpush1.bf16.msra.mxu0 %v927
      %1023 = vmatprep.subr.bf16.mxu0 0
      %1024 = vmatpush1.bf16.msra.mxu0 %v926
      %1025 = vmatprep.subr.bf16.mxu0 0
      %1026 = vmatpush2.bf16.msra.mxu0 0
      %1027 = vmatprep.subr.bf16.mxu0 0
      %1028 = vmatpush2.bf16.msra.mxu0 0
      %1029 = vmatprep.subr.bf16.mxu0 0
      %1030 = vmatpush2.bf16.msra.mxu0 0
      %1031 = vmatprep.subr.bf16.mxu0 0
      %1032 = vmatpush2.bf16.msra.mxu0 0
      %1033 = vmatprep.subr.bf16.mxu0 0
      %1034 = vmatpush2.bf16.msra.mxu0 0
      %1035 = vmatprep.subr.bf16.mxu0 0
      %1036 = vmatpush2.bf16.msra.mxu0 %v936
      %1037 = vmatprep.subr.bf16.mxu0 0
      %1038 = vmatpush2.bf16.msra.mxu0 %v935
      %1039 = vmatprep.subr.bf16.mxu0 0
      %1040 = vmatpush2.bf16.msra.mxu0 %v934
      %1041 = vmatprep.mubr.bf16.mxu0 %v966
      %1042 = vmatmul.mubr.bf16.gmra.mxu0 %v746
      %v1043 = vpop.f32.mrf.mxu0
      %v1044 = vadd.f32 %v1003, %v1043
      %v1045 = vpop.f32.mrf.mxu0
      %v1046 = vpop.f32.mrf.mxu0
      %v1047 = vadd.f32 %v1006, %v1046
      %v1048 = vpop.f32.mrf.mxu0
      %1049 = vdwg.mxu0
      %v1050 = vld [vmem:[%s5] sm:$0x1]
      %v1052 = vlaneseq
      %v1053 = vshrl.u32 %v1052, 7
      %v1054 = vsub.s32 0, %v1053
      %v1055 = vrot.slane %v1050, %v1054
      %v1057 = vmul.f32 %v1044, %v1055
      %v1058 = vmul.f32 %v1047, %v1055
      %v1059 = vld [vmem:[%s6] sm:$0x1]
      %v1061 = vlaneseq
      %v1062 = vshrl.u32 %v1061, 7
      %v1063 = vsub.s32 0, %v1062
      %v1064 = vrot.slane %v1059, %v1063
      %v1066 = vadd.f32 %v1057, %v1064
      %v1067 = vadd.f32 %v1058, %v1064
      %v1068 = vmax.f32 %v1066, 0.0
      %v1069 = vmax.f32 %v1067, 0.0
      %1070 = vst [vmem:[%s278] sm:$0xff] %v1068
      %1071 = vst [vmem:[%s278 + $0x8] sm:$0xff] %v1069
      %p1072 = scmp.lt.s32.totalorder %s18, 1
      %s1073 = scalar_select %p1072, %s18, 1
      %s1074 = smul.addr %s1073, 2
      %s1075 = smul.addr %s1074, 8
      %s1076 = scalar_lea.vmem %s7, %s1075
      // Predicated region
      $region49: #{_double_conv_forward.1} parent=47 // pred_check
        %p1077 = pneg %p188
      $region50: #{_double_conv_forward.1} parent=47 // pred_check_branch
        %1079 = sbr.rel (%p1077) target = $region52
      $region51: #{_double_conv_forward.1} parent=47 // pred_region
        _
      $region52: #{_double_conv_forward.1} parent=47 // pred_fallthru
        _
    $region48: #{_double_conv_forward.1} parent=5 // pred_fallthru
      _
    %p1080 = scmp.le.s32.totalorder 2, %s13
    // Predicated region
    $region53: #{_double_conv_forward.1} parent=5 // pred_check
      %p1081 = pneg %p1080
    $region54: #{_double_conv_forward.1} parent=5 // pred_check_branch
      %1083 = sbr.rel (%p1081) target = $region56
    $region55: #{_double_conv_forward.1} parent=5 // pred_region
      %s1084 = ssub.s32 %s13, 2
      // Predicated region
      $region57: #{_double_conv_forward.1} parent=55 // pred_check
        %p1085 = pneg %p194
      $region58: #{_double_conv_forward.1} parent=55 // pred_check_branch
        %1087 = sbr.rel (%p1085) target = $region60
      $region59: #{_double_conv_forward.1} parent=55 // pred_region
        %p1088 = scmp.lt.s32.totalorder %s19, 1
        %s1089 = scalar_select %p1088, %s19, 1
        %s1090 = smul.addr %s1089, 2
        %s1091 = smul.addr %s1090, 8
        %s1092 = scalar_lea.vmem %s7, %s1091
      $region60: #{_double_conv_forward.1} parent=55 // pred_fallthru
        _
    $region56: #{_double_conv_forward.1} parent=5 // pred_fallthru
      _
  $region6: #{_double_conv_forward.1} parent=0 // loop_footer
    %s17 = sadd.s32 1, %s13
  $region7: #{_double_conv_forward.1} parent=0 // loop_footer_branch
    %12 = sbr.rel target = $region3
  $region8: #{_double_conv_forward.1} parent=0 // loop_exit
    _

</llo_original>
